<compile_context>
chip_gen: v6e
topology: v6e:2x2x1
jax: 0.10.0
libtpu: 0.0.40
codegen_flags: <defaults>
</compile_context>

<pallas_src>
import jax
import jax.numpy as jnp
from jax.experimental import pallas as pl
from jax.experimental.pallas import tpu as pltpu


# ----------------------------- fused Pallas kernel ---------------------------

def make_fused_kernel(S, D, I, depth):
    """Grouped MLP stack collapsed to depth+1 matmuls + fused softmax over S."""
    n_mid = depth - 1

    def kernel(*refs):
        x_ref = refs[0]
        w1_ref, b1_ref = refs[1], refs[2]
        mid_refs = refs[3:3 + 2 * n_mid]
        wf_ref = refs[3 + 2 * n_mid]
        bf_ref = refs[4 + 2 * n_mid]
        out_ref = refs[5 + 2 * n_mid]

        # first layer: all groups see the same x -> one (bb, D) @ (D, S*I)
        h = jnp.dot(x_ref[...], w1_ref[...], preferred_element_type=jnp.float32)
        h = jnp.maximum(h + b1_ref[...], 0.0)

        # middle layers: block-diagonal (S*I, S*I), one MXU push per level
        for l in range(n_mid):
            h = jnp.dot(h, mid_refs[2 * l][...], preferred_element_type=jnp.float32)
            h = jnp.maximum(h + mid_refs[2 * l + 1][...], 0.0)

        # final layer: block-diagonal with columns permuted to s-major order,
        # so y[:, s*D + d] == z[b, d, s]  (z = flat.view(B, -1, S) in PyTorch)
        y = jnp.dot(h, wf_ref[...], preferred_element_type=jnp.float32) + bf_ref[...]

        # softmax across S register-held (bb, D) slabs — pure VPU, no XLU reduce
        ys = [y[:, s * D:(s + 1) * D] for s in range(S)]
        m = ys[0]
        for v in ys[1:]:
            m = jnp.maximum(m, v)
        es = [jnp.exp(v - m) for v in ys]
        denom = es[0]
        for e in es[1:]:
            denom = denom + e
        inv = 1.0 / denom

        # single contiguous lane-dense store of the (bb, S*D) result (s-major)
        out_ref[...] = jnp.concatenate([e * inv for e in es], axis=1).astype(out_ref.dtype)

    return kernel


# ------------------------------- wrapper --------------------------------------

def parallel_controler_forward(x, prepped, *, controler_size, depth):
    """Matches Parallel_Controler.forward for 2-D x_input of shape (B, input_dim)."""
    B, D = x.shape
    S = controler_size
    w1c, b1c, wm_list, bm_list, wf_out, bf_out = prepped
    I = w1c.shape[-1] // S

    # batch tiling: single block for small B, 128-row tiles for large batches
    bb = 128 if (B > 128 and B % 128 == 0) else B
    n_bt = B // bb

    weight_args = [w1c, b1c]
    for w, b in zip(wm_list, bm_list):
        weight_args += [w, b]
    weight_args += [wf_out, bf_out]

    in_specs = [pl.BlockSpec((bb, D), lambda i: (i, 0))]
    in_specs += [pl.BlockSpec(a.shape, lambda i: (0, 0)) for a in weight_args]

    call = pl.pallas_call(
        make_fused_kernel(S, D, I, depth),
        out_shape=jax.ShapeDtypeStruct((B, S * D), jnp.float32),
        grid=(n_bt,),
        in_specs=in_specs,
        out_specs=pl.BlockSpec((bb, S * D), lambda i: (i, 0)),
        compiler_params=pltpu.CompilerParams(dimension_semantics=("parallel",)),
    )
    y = call(x, *weight_args)                       # (B, S*D), s-major

    # (B, S, D) -> (B, D, S): same mapping as PyTorch flat.view(B, -1, S) + softmax(dim=2)
    return y.reshape(B, S, D).transpose(0, 2, 1)


# -------------------- host-side (one-time) parameter prep ---------------------

def prepare_params(params, S, D, I, depth):
    """Turn per-group grouped-conv weights into concatenated / block-diagonal /
    column-permuted matrices so the kernel needs only depth+1 matmuls."""
    w1, b1, wm, bm, wf, bf = params

    # first layer: (S, D, I) -> (D, S*I)   (same x feeds every group)
    w1c = jnp.transpose(w1, (1, 0, 2)).reshape(D, S * I)
    b1c = b1.reshape(1, S * I)

    # middle layers: per-level block-diagonal (S*I, S*I) + bias rows
    wm_list, bm_list = [], []
    for l in range(depth - 1):
        blk = jnp.zeros((S * I, S * I), jnp.float32)
        for g in range(S):
            blk = blk.at[g * I:(g + 1) * I, g * I:(g + 1) * I].set(wm[l * S + g])
        wm_list.append(blk)
        bm_list.append(bm[l * S:(l + 1) * S].reshape(1, S * I))

    # final layer: block-diagonal (S*I, S*D) in PyTorch flat-channel order,
    # then permute columns so kernel output column s*D+d == flat channel d*S+s.
    wf_full = jnp.zeros((S * I, S * D), jnp.float32)
    for g in range(S):
        wf_full = wf_full.at[g * I:(g + 1) * I, g * D:(g + 1) * D].set(wf[g])
    bf_full = bf.reshape(S * D)
    j = jnp.arange(S * D)
    src = (j % D) * S + (j // D)
    wf_out = wf_full[:, src]
    bf_out = bf_full[src].reshape(1, S * D)

    return w1c, b1c, wm_list, bm_list, wf_out, bf_out


# ------------------------- deterministic parameters ---------------------------

def init_params(key, D, I, S, depth):
    """Shapes follow the grouped Conv1d(kernel_size=1) weights, stored as (group, in, out)."""
    ks = jax.random.split(key, 6)

    def uni(k, shape, fan_in):
        bound = 1.0 / (fan_in ** 0.5)
        return jax.random.uniform(k, shape, jnp.float32, -bound, bound)

    w1 = uni(ks[0], (S, D, I), D)                     # first conv  (per group: D -> I)
    b1 = uni(ks[1], (S, I), D)
    wm = uni(ks[2], ((depth - 1) * S, I, I), I)       # middle convs (per group: I -> I)
    bm = uni(ks[3], ((depth - 1) * S, I), I)
    wf = uni(ks[4], (S, I, D), I)                     # final conv  (per group: I -> D)
    bf = uni(ks[5], (S, D), I)
    return w1, b1, wm, bm, wf, bf


# ------------------------------ pure-JAX reference ----------------------------

def reference(x, params, S, depth):
    w1, b1, wm, bm, wf, bf = params
    B, D = x.shape
    outs = []
    for g in range(S):
        h = jnp.maximum(x @ w1[g] + b1[g], 0.0)
        for l in range(depth - 1):
            idx = l * S + g
            h = jnp.maximum(h @ wm[idx] + bm[idx], 0.0)
        outs.append(h @ wf[g] + bf[g])
    flat = jnp.concatenate(outs, axis=1)              # (B, S*D), group-contiguous
    z = flat.reshape(B, D, S)                         # == PyTorch flat.view(B, -1, S)
    return jax.nn.softmax(z, axis=-1)


# ---------------------------------- main ---------------------------------------

if __name__ == "__main__":
    B, INPUT_DIM, INNER_DIM, S, DEPTH = 2, 8, 32, 3, 4

    key = jax.random.PRNGKey(0)
    kx, kp = jax.random.split(key)
    x = jax.random.normal(kx, (B, INPUT_DIM), dtype=jnp.float32)
    raw_params = init_params(kp, INPUT_DIM, INNER_DIM, S, DEPTH)
    prepped = prepare_params(raw_params, S, INPUT_DIM, INNER_DIM, DEPTH)

    out = parallel_controler_forward(x, prepped, controler_size=S, depth=DEPTH)
    out = jax.block_until_ready(out)

    ref = jax.block_until_ready(reference(x, raw_params, S, DEPTH))
    assert out.shape == (B, INPUT_DIM, S), out.shape
    assert jnp.allclose(out, ref, atol=1e-5, rtol=1e-5), float(jnp.max(jnp.abs(out - ref)))
    # softmax rows sum to 1
    assert jnp.allclose(jnp.sum(out, axis=-1), 1.0, atol=1e-5)

    print("KERNEL_OK")
</pallas_src>

<mosaic_0001>
module attributes {stable_mosaic.version = 11 : i64} {
  func.func @kernel(%arg0: i32, %arg1: memref<2x8xf32, #tpu.memory_space<vmem>>, %arg2: memref<8x96xf32, #tpu.memory_space<vmem>>, %arg3: memref<1x96xf32, #tpu.memory_space<vmem>>, %arg4: memref<96x96xf32, #tpu.memory_space<vmem>>, %arg5: memref<1x96xf32, #tpu.memory_space<vmem>>, %arg6: memref<96x96xf32, #tpu.memory_space<vmem>>, %arg7: memref<1x96xf32, #tpu.memory_space<vmem>>, %arg8: memref<96x96xf32, #tpu.memory_space<vmem>>, %arg9: memref<1x96xf32, #tpu.memory_space<vmem>>, %arg10: memref<96x24xf32, #tpu.memory_space<vmem>>, %arg11: memref<1x24xf32, #tpu.memory_space<vmem>>, %arg12: memref<2x24xf32, #tpu.memory_space<vmem>>) attributes {dimension_semantics = [#tpu.dimension_semantics<parallel>], iteration_bounds = array<i64: 1>, scalar_prefetch = 0 : i64, scratch_operands = 0 : i64, tpu.core_type = #tpu.core_type<tc>, window_params = [{transform_indices = @transform_0, window_bounds = array<i64: 2, 8>}, {pipeline_mode = #tpu.pipeline_mode<synchronous>, transform_indices = @transform_1, window_bounds = array<i64: 8, 96>}, {pipeline_mode = #tpu.pipeline_mode<synchronous>, transform_indices = @transform_2, window_bounds = array<i64: 1, 96>}, {pipeline_mode = #tpu.pipeline_mode<synchronous>, transform_indices = @transform_3, window_bounds = array<i64: 96, 96>}, {pipeline_mode = #tpu.pipeline_mode<synchronous>, transform_indices = @transform_4, window_bounds = array<i64: 1, 96>}, {pipeline_mode = #tpu.pipeline_mode<synchronous>, transform_indices = @transform_5, window_bounds = array<i64: 96, 96>}, {pipeline_mode = #tpu.pipeline_mode<synchronous>, transform_indices = @transform_6, window_bounds = array<i64: 1, 96>}, {pipeline_mode = #tpu.pipeline_mode<synchronous>, transform_indices = @transform_7, window_bounds = array<i64: 96, 96>}, {pipeline_mode = #tpu.pipeline_mode<synchronous>, transform_indices = @transform_8, window_bounds = array<i64: 1, 96>}, {pipeline_mode = #tpu.pipeline_mode<synchronous>, transform_indices = @transform_9, window_bounds = array<i64: 96, 24>}, {pipeline_mode = #tpu.pipeline_mode<synchronous>, transform_indices = @transform_10, window_bounds = array<i64: 1, 24>}, {transform_indices = @transform_11, window_bounds = array<i64: 2, 24>}]} {
    %c0 = arith.constant 0 : index
    %c0_0 = arith.constant 0 : index
    %0 = vector.load %arg1[%c0, %c0_0] : memref<2x8xf32, #tpu.memory_space<vmem>>, vector<2x8xf32>
    %c0_1 = arith.constant 0 : index
    %c0_2 = arith.constant 0 : index
    %1 = vector.load %arg2[%c0_1, %c0_2] : memref<8x96xf32, #tpu.memory_space<vmem>>, vector<8x96xf32>
    %cst = arith.constant dense<0.000000e+00> : vector<2x96xf32>
    %2 = tpu.matmul %0, %1, %cst {dimension_numbers = #tpu.dot_dimension_numbers<[1], [0], [0], [1], [0, 0, 1, 1], [], []>} : vector<2x8xf32>, vector<8x96xf32>, vector<2x96xf32> -> vector<2x96xf32>
    %c0_3 = arith.constant 0 : index
    %c0_4 = arith.constant 0 : index
    %3 = vector.load %arg3[%c0_3, %c0_4] : memref<1x96xf32, #tpu.memory_space<vmem>>, vector<1x96xf32>
    %4 = vector.broadcast %3 : vector<1x96xf32> to vector<2x96xf32>
    %5 = arith.addf %2, %4 : vector<2x96xf32>
    %cst_5 = arith.constant 0.000000e+00 : f32
    %6 = vector.broadcast %cst_5 : f32 to vector<2x96xf32>
    %7 = arith.maximumf %5, %6 : vector<2x96xf32>
    %c0_6 = arith.constant 0 : index
    %c0_7 = arith.constant 0 : index
    %8 = vector.load %arg4[%c0_6, %c0_7] : memref<96x96xf32, #tpu.memory_space<vmem>>, vector<96x96xf32>
    %cst_8 = arith.constant dense<0.000000e+00> : vector<2x96xf32>
    %9 = tpu.matmul %7, %8, %cst_8 {dimension_numbers = #tpu.dot_dimension_numbers<[1], [0], [0], [1], [0, 0, 1, 1], [], []>} : vector<2x96xf32>, vector<96x96xf32>, vector<2x96xf32> -> vector<2x96xf32>
    %c0_9 = arith.constant 0 : index
    %c0_10 = arith.constant 0 : index
    %10 = vector.load %arg5[%c0_9, %c0_10] : memref<1x96xf32, #tpu.memory_space<vmem>>, vector<1x96xf32>
    %11 = vector.broadcast %10 : vector<1x96xf32> to vector<2x96xf32>
    %12 = arith.addf %9, %11 : vector<2x96xf32>
    %cst_11 = arith.constant 0.000000e+00 : f32
    %13 = vector.broadcast %cst_11 : f32 to vector<2x96xf32>
    %14 = arith.maximumf %12, %13 : vector<2x96xf32>
    %c0_12 = arith.constant 0 : index
    %c0_13 = arith.constant 0 : index
    %15 = vector.load %arg6[%c0_12, %c0_13] : memref<96x96xf32, #tpu.memory_space<vmem>>, vector<96x96xf32>
    %cst_14 = arith.constant dense<0.000000e+00> : vector<2x96xf32>
    %16 = tpu.matmul %14, %15, %cst_14 {dimension_numbers = #tpu.dot_dimension_numbers<[1], [0], [0], [1], [0, 0, 1, 1], [], []>} : vector<2x96xf32>, vector<96x96xf32>, vector<2x96xf32> -> vector<2x96xf32>
    %c0_15 = arith.constant 0 : index
    %c0_16 = arith.constant 0 : index
    %17 = vector.load %arg7[%c0_15, %c0_16] : memref<1x96xf32, #tpu.memory_space<vmem>>, vector<1x96xf32>
    %18 = vector.broadcast %17 : vector<1x96xf32> to vector<2x96xf32>
    %19 = arith.addf %16, %18 : vector<2x96xf32>
    %cst_17 = arith.constant 0.000000e+00 : f32
    %20 = vector.broadcast %cst_17 : f32 to vector<2x96xf32>
    %21 = arith.maximumf %19, %20 : vector<2x96xf32>
    %c0_18 = arith.constant 0 : index
    %c0_19 = arith.constant 0 : index
    %22 = vector.load %arg8[%c0_18, %c0_19] : memref<96x96xf32, #tpu.memory_space<vmem>>, vector<96x96xf32>
    %cst_20 = arith.constant dense<0.000000e+00> : vector<2x96xf32>
    %23 = tpu.matmul %21, %22, %cst_20 {dimension_numbers = #tpu.dot_dimension_numbers<[1], [0], [0], [1], [0, 0, 1, 1], [], []>} : vector<2x96xf32>, vector<96x96xf32>, vector<2x96xf32> -> vector<2x96xf32>
    %c0_21 = arith.constant 0 : index
    %c0_22 = arith.constant 0 : index
    %24 = vector.load %arg9[%c0_21, %c0_22] : memref<1x96xf32, #tpu.memory_space<vmem>>, vector<1x96xf32>
    %25 = vector.broadcast %24 : vector<1x96xf32> to vector<2x96xf32>
    %26 = arith.addf %23, %25 : vector<2x96xf32>
    %cst_23 = arith.constant 0.000000e+00 : f32
    %27 = vector.broadcast %cst_23 : f32 to vector<2x96xf32>
    %28 = arith.maximumf %26, %27 : vector<2x96xf32>
    %c0_24 = arith.constant 0 : index
    %c0_25 = arith.constant 0 : index
    %29 = vector.load %arg10[%c0_24, %c0_25] : memref<96x24xf32, #tpu.memory_space<vmem>>, vector<96x24xf32>
    %cst_26 = arith.constant dense<0.000000e+00> : vector<2x24xf32>
    %30 = tpu.matmul %28, %29, %cst_26 {dimension_numbers = #tpu.dot_dimension_numbers<[1], [0], [0], [1], [0, 0, 1, 1], [], []>} : vector<2x96xf32>, vector<96x24xf32>, vector<2x24xf32> -> vector<2x24xf32>
    %c0_27 = arith.constant 0 : index
    %c0_28 = arith.constant 0 : index
    %31 = vector.load %arg11[%c0_27, %c0_28] : memref<1x24xf32, #tpu.memory_space<vmem>>, vector<1x24xf32>
    %32 = vector.broadcast %31 : vector<1x24xf32> to vector<2x24xf32>
    %33 = arith.addf %30, %32 : vector<2x24xf32>
    %34 = vector.extract_strided_slice %33 {offsets = [0, 0], sizes = [2, 8], strides = [1, 1]} : vector<2x24xf32> to vector<2x8xf32>
    %35 = vector.extract_strided_slice %33 {offsets = [0, 8], sizes = [2, 8], strides = [1, 1]} : vector<2x24xf32> to vector<2x8xf32>
    %36 = vector.extract_strided_slice %33 {offsets = [0, 16], sizes = [2, 8], strides = [1, 1]} : vector<2x24xf32> to vector<2x8xf32>
    %37 = arith.maximumf %34, %35 : vector<2x8xf32>
    %38 = arith.maximumf %37, %36 : vector<2x8xf32>
    %39 = arith.subf %34, %38 : vector<2x8xf32>
    %40 = math.exp %39 : vector<2x8xf32>
    %41 = arith.subf %35, %38 : vector<2x8xf32>
    %42 = math.exp %41 : vector<2x8xf32>
    %43 = arith.subf %36, %38 : vector<2x8xf32>
    %44 = math.exp %43 : vector<2x8xf32>
    %45 = arith.addf %40, %42 : vector<2x8xf32>
    %46 = arith.addf %45, %44 : vector<2x8xf32>
    %cst_29 = arith.constant 1.000000e+00 : f32
    %47 = vector.broadcast %cst_29 : f32 to vector<2x8xf32>
    %48 = arith.divf %47, %46 : vector<2x8xf32>
    %49 = arith.mulf %40, %48 : vector<2x8xf32>
    %50 = arith.mulf %42, %48 : vector<2x8xf32>
    %51 = arith.mulf %44, %48 : vector<2x8xf32>
    %52 = tpu.concatenate %49, %50, %51 in 1 : vector<2x8xf32>, vector<2x8xf32>, vector<2x8xf32> -> vector<2x24xf32>
    %c0_30 = arith.constant 0 : index
    %c0_31 = arith.constant 0 : index
    %53 = vector.load %arg12[%c0_30, %c0_31] : memref<2x24xf32, #tpu.memory_space<vmem>>, vector<2x24xf32>
    tpu.vector_store %arg12[%c0_30, %c0_31], %52 {strides = array<i32>} : memref<2x24xf32, #tpu.memory_space<vmem>>, vector<2x24xf32>,
    return
  }
  func.func @transform_0(%arg0: i32) -> (i32, i32) {
    %c0_i32 = arith.constant 0 : i32
    %c0_i32_0 = arith.constant 0 : i32
    return %arg0, %c0_i32 : i32, i32
  }
  func.func @transform_1(%arg0: i32) -> (i32, i32) {
    %c0_i32 = arith.constant 0 : i32
    %c0_i32_0 = arith.constant 0 : i32
    %c0_i32_1 = arith.constant 0 : i32
    return %c0_i32, %c0_i32_0 : i32, i32
  }
  func.func @transform_2(%arg0: i32) -> (i32, i32) {
    %c0_i32 = arith.constant 0 : i32
    %c0_i32_0 = arith.constant 0 : i32
    %c0_i32_1 = arith.constant 0 : i32
    return %c0_i32, %c0_i32_0 : i32, i32
  }
  func.func @transform_3(%arg0: i32) -> (i32, i32) {
    %c0_i32 = arith.constant 0 : i32
    %c0_i32_0 = arith.constant 0 : i32
    %c0_i32_1 = arith.constant 0 : i32
    return %c0_i32, %c0_i32_0 : i32, i32
  }
  func.func @transform_4(%arg0: i32) -> (i32, i32) {
    %c0_i32 = arith.constant 0 : i32
    %c0_i32_0 = arith.constant 0 : i32
    %c0_i32_1 = arith.constant 0 : i32
    return %c0_i32, %c0_i32_0 : i32, i32
  }
  func.func @transform_5(%arg0: i32) -> (i32, i32) {
    %c0_i32 = arith.constant 0 : i32
    %c0_i32_0 = arith.constant 0 : i32
    %c0_i32_1 = arith.constant 0 : i32
    return %c0_i32, %c0_i32_0 : i32, i32
  }
  func.func @transform_6(%arg0: i32) -> (i32, i32) {
    %c0_i32 = arith.constant 0 : i32
    %c0_i32_0 = arith.constant 0 : i32
    %c0_i32_1 = arith.constant 0 : i32
    return %c0_i32, %c0_i32_0 : i32, i32
  }
  func.func @transform_7(%arg0: i32) -> (i32, i32) {
    %c0_i32 = arith.constant 0 : i32
    %c0_i32_0 = arith.constant 0 : i32
    %c0_i32_1 = arith.constant 0 : i32
    return %c0_i32, %c0_i32_0 : i32, i32
  }
  func.func @transform_8(%arg0: i32) -> (i32, i32) {
    %c0_i32 = arith.constant 0 : i32
    %c0_i32_0 = arith.constant 0 : i32
    %c0_i32_1 = arith.constant 0 : i32
    return %c0_i32, %c0_i32_0 : i32, i32
  }
  func.func @transform_9(%arg0: i32) -> (i32, i32) {
    %c0_i32 = arith.constant 0 : i32
    %c0_i32_0 = arith.constant 0 : i32
    %c0_i32_1 = arith.constant 0 : i32
    return %c0_i32, %c0_i32_0 : i32, i32
  }
  func.func @transform_10(%arg0: i32) -> (i32, i32) {
    %c0_i32 = arith.constant 0 : i32
    %c0_i32_0 = arith.constant 0 : i32
    %c0_i32_1 = arith.constant 0 : i32
    return %c0_i32, %c0_i32_0 : i32, i32
  }
  func.func @transform_11(%arg0: i32) -> (i32, i32) {
    %c0_i32 = arith.constant 0 : i32
    %c0_i32_0 = arith.constant 0 : i32
    return %arg0, %c0_i32 : i32, i32
  }
}

</mosaic_0001>

<llo_original>
// kernel: tpu_custom_call.1
$region0: #{tpu_custom_call.1}
  #allocation0 [shape = 'u32[]', space=smem, size = 0x4, offset = 0x4, fixed_abs, tag = 'smem constant byte address 0x4 - core index']
  #allocation1 [shape = 'u32[144,128]{1,0:T(1,128)}', space=vmem, size = 0x12000, scoped, tag = 'internal scratch']
  %s0 = inlined_call_operand.vmem [shape: f32[2,8], index: 0, kind: input, shape index: {}]
  %s1 = inlined_call_operand.vmem [shape: f32[8,96], index: 1, kind: input, shape index: {}]
  %s2 = inlined_call_operand.vmem [shape: f32[1,96], index: 2, kind: input, shape index: {}]
  %s3 = inlined_call_operand.vmem [shape: f32[96,96], index: 3, kind: input, shape index: {}]
  %s4 = inlined_call_operand.vmem [shape: f32[1,96], index: 4, kind: input, shape index: {}]
  %s5 = inlined_call_operand.hbm [shape: f32[96,96], index: 5, kind: input, shape index: {}]
  %s6 = inlined_call_operand.vmem [shape: f32[1,96], index: 6, kind: input, shape index: {}]
  %s7 = inlined_call_operand.hbm [shape: f32[96,96], index: 7, kind: input, shape index: {}]
  %s8 = inlined_call_operand.vmem [shape: f32[1,96], index: 8, kind: input, shape index: {}]
  %s9 = inlined_call_operand.vmem [shape: f32[96,24], index: 9, kind: input, shape index: {}]
  %s10 = inlined_call_operand.vmem [shape: f32[1,24], index: 10, kind: input, shape index: {}]
  %s11 = inlined_call_operand.hbm [shape: f32[2,24], index: 11, kind: output, shape index: {}]
  %s12 = sld [smem:[#allocation0]]
  $region62: #{tpu_custom_call.1} parent=0
    _
  %s14 = ssub.s32 1, %s12
  %s15 = scalar_select 0, %s14, %s12
  $region1: #{tpu_custom_call.1} parent=0
    #allocation2 [shape = 'u8[49152]{0}', space=vmem, size = 0xc000, scoped, tag = 'input window, operand 5, single buffered']
    #allocation3 [shape = 's32[1]{0}', space=sflag, size = 0x4, scoped, tag = 'scoped memory for tpu_custom_call.1']
    #allocation4 [shape = 's32[1]{0}', space=sflag, size = 0x4, scoped, tag = 'scoped memory for tpu_custom_call.1']
    #allocation5 [shape = 'u8[49152]{0}', space=vmem, size = 0xc000, scoped, tag = 'input window, operand 7, single buffered']
    #allocation6 [shape = 's32[1]{0}', space=sflag, size = 0x4, scoped, tag = 'scoped memory for tpu_custom_call.1']
    #allocation7 [shape = 'u8[1024]{0}', space=vmem, size = 0x400, scoped, tag = 'output window, operand 0, single buffered']
    %16 = vsyncpa [#allocation3], 0
    %17 = vsyncpa [#allocation6], 0
    %18 = vsyncpa [#allocation4], 0
    // Predicated region
    $region2: #{tpu_custom_call.1} parent=1 // pred_check
      _
    $region3: #{tpu_custom_call.1} parent=1 // pred_check_branch
      %20 = sbr.rel (0) target = $region5
    $region4: #{tpu_custom_call.1} parent=1 // pred_region
      _
    $region5: #{tpu_custom_call.1} parent=1 // pred_fallthru
      _
    // Predicated region
    $region6: #{tpu_custom_call.1} parent=1 // pred_check
      _
    $region7: #{tpu_custom_call.1} parent=1 // pred_check_branch
      %22 = sbr.rel (0) target = $region9
    $region8: #{tpu_custom_call.1} parent=1 // pred_region
      _
    $region9: #{tpu_custom_call.1} parent=1 // pred_fallthru
      _
    // Predicated region
    $region10: #{tpu_custom_call.1} parent=1 // pred_check
      _
    $region11: #{tpu_custom_call.1} parent=1 // pred_check_branch
      %24 = sbr.rel (0) target = $region13
    $region12: #{tpu_custom_call.1} parent=1 // pred_region
      _
    $region13: #{tpu_custom_call.1} parent=1 // pred_fallthru
      _
    // Predicated region
    $region14: #{tpu_custom_call.1} parent=1 // pred_check
      _
    $region15: #{tpu_custom_call.1} parent=1 // pred_check_branch
      %26 = sbr.rel (0) target = $region17
    $region16: #{tpu_custom_call.1} parent=1 // pred_region
      _
    $region17: #{tpu_custom_call.1} parent=1 // pred_fallthru
      _
    // Predicated region
    $region18: #{tpu_custom_call.1} parent=1 // pred_check
      _
    $region19: #{tpu_custom_call.1} parent=1 // pred_check_branch
      %28 = sbr.rel (0) target = $region21
    $region20: #{tpu_custom_call.1} parent=1 // pred_region
      _
    $region21: #{tpu_custom_call.1} parent=1 // pred_fallthru
      _
    // Predicated region
    $region22: #{tpu_custom_call.1} parent=1 // pred_check
      _
    $region23: #{tpu_custom_call.1} parent=1 // pred_check_branch
      %30 = sbr.rel (0) target = $region25
    $region24: #{tpu_custom_call.1} parent=1 // pred_region
      %s32 = ssub.s32 1536, 1536
      %33 = vsyncadd [#allocation3], %s32
      %s34 = sshll.u32 [#allocation2], 4
      %s35 = int_to_ptr.vmem [resolvable:$true] %s34
      %40 = dma.hbm_to_vmem [thread:$0]  %s5, 1536, %s35, [#allocation3], 128, 128, 8
    $region25: #{tpu_custom_call.1} parent=1 // pred_fallthru
      _
    // Predicated region
    $region26: #{tpu_custom_call.1} parent=1 // pred_check
      _
    $region27: #{tpu_custom_call.1} parent=1 // pred_check_branch
      %42 = sbr.rel (0) target = $region29
    $region28: #{tpu_custom_call.1} parent=1 // pred_region
      _
    $region29: #{tpu_custom_call.1} parent=1 // pred_fallthru
      _
    // Predicated region
    $region30: #{tpu_custom_call.1} parent=1 // pred_check
      _
    $region31: #{tpu_custom_call.1} parent=1 // pred_check_branch
      %44 = sbr.rel (0) target = $region33
    $region32: #{tpu_custom_call.1} parent=1 // pred_region
      %s46 = ssub.s32 1536, 1536
      %47 = vsyncadd [#allocation6], %s46
      %s48 = sshll.u32 [#allocation5], 4
      %s49 = int_to_ptr.vmem [resolvable:$true] %s48
      %54 = dma.hbm_to_vmem [thread:$0]  %s7, 1536, %s49, [#allocation6], 128, 128, 8
    $region33: #{tpu_custom_call.1} parent=1 // pred_fallthru
      _
    // Predicated region
    $region34: #{tpu_custom_call.1} parent=1 // pred_check
      _
    $region35: #{tpu_custom_call.1} parent=1 // pred_check_branch
      %56 = sbr.rel (0) target = $region37
    $region36: #{tpu_custom_call.1} parent=1 // pred_region
      _
    $region37: #{tpu_custom_call.1} parent=1 // pred_fallthru
      _
    // Predicated region
    $region38: #{tpu_custom_call.1} parent=1 // pred_check
      _
    $region39: #{tpu_custom_call.1} parent=1 // pred_check_branch
      %58 = sbr.rel (0) target = $region41
    $region40: #{tpu_custom_call.1} parent=1 // pred_region
      _
    $region41: #{tpu_custom_call.1} parent=1 // pred_fallthru
      _
    // Predicated region
    $region42: #{tpu_custom_call.1} parent=1 // pred_check
      _
    $region43: #{tpu_custom_call.1} parent=1 // pred_check_branch
      %60 = sbr.rel (0) target = $region45
    $region44: #{tpu_custom_call.1} parent=1 // pred_region
      _
    $region45: #{tpu_custom_call.1} parent=1 // pred_fallthru
      _
    // Predicated region
    $region46: #{tpu_custom_call.1} parent=1 // pred_check
      _
    $region47: #{tpu_custom_call.1} parent=1 // pred_check_branch
      %62 = sbr.rel (0) target = $region49
    $region48: #{tpu_custom_call.1} parent=1 // pred_region
      %63 = dma.done [#allocation3], 1536
    $region49: #{tpu_custom_call.1} parent=1 // pred_fallthru
      _
    // Predicated region
    $region50: #{tpu_custom_call.1} parent=1 // pred_check
      _
    $region51: #{tpu_custom_call.1} parent=1 // pred_check_branch
      %65 = sbr.rel (0) target = $region53
    $region52: #{tpu_custom_call.1} parent=1 // pred_region
      %66 = dma.done [#allocation6], 1536
    $region53: #{tpu_custom_call.1} parent=1 // pred_fallthru
      _
    %v67 = vld [vmem:[%s0] sm:$0x3]
    %v68 = vld [vmem:[%s1] sm:$0xff]
    %v69 = vld [vmem:[%s2] sm:$0x1]
    %v71 = vlaneseq
    %v72 = vshrl.u32 %v71, 7
    %v73 = vsub.s32 0, %v72
    %v74 = vrot.slane %v69, %v73
    %vm76 = vcmask 64512
    %v78 = vsel %vm76, %v67, 0
    %80 = vmatprep.subr.mxu0 0.0
    %81 = vmatpush1.msra.mxu0 0.0
    %82 = vmatprep.subr.mxu0 0.0
    %83 = vmatpush1.msra.mxu0 0.0
    %84 = vmatprep.subr.mxu0 0.0
    %85 = vmatpush1.msra.mxu0 0.0
    %86 = vmatprep.subr.mxu0 0.0
    %87 = vmatpush1.msra.mxu0 0.0
    %88 = vmatprep.subr.mxu0 0.0
    %89 = vmatpush1.msra.mxu0 0.0
    %90 = vmatprep.subr.mxu0 0.0
    %91 = vmatpush1.msra.mxu0 0.0
    %92 = vmatprep.subr.mxu0 0.0
    %93 = vmatpush1.msra.mxu0 0.0
    %94 = vmatprep.subr.mxu0 0.0
    %95 = vmatpush1.msra.mxu0 0.0
    %96 = vmatprep.subr.mxu0 0.0
    %97 = vmatpush1.msra.mxu0 0.0
    %98 = vmatprep.subr.mxu0 0.0
    %99 = vmatpush1.msra.mxu0 0.0
    %100 = vmatprep.subr.mxu0 0.0
    %101 = vmatpush1.msra.mxu0 0.0
    %102 = vmatprep.subr.mxu0 0.0
    %103 = vmatpush1.msra.mxu0 0.0
    %104 = vmatprep.subr.mxu0 0.0
    %105 = vmatpush1.msra.mxu0 0.0
    %106 = vmatprep.subr.mxu0 0.0
    %107 = vmatpush1.msra.mxu0 0.0
    %108 = vmatprep.subr.mxu0 0.0
    %109 = vmatpush1.msra.mxu0 0.0
    %110 = vmatprep.subr.mxu0 0.0
    %111 = vmatpush1.msra.mxu0 %v68
    %112 = vmatprep.subr.mxu0 0.0
    %113 = vmatpush2.msra.mxu0 0.0
    %114 = vmatprep.subr.mxu0 0.0
    %115 = vmatpush2.msra.mxu0 0.0
    %116 = vmatprep.subr.mxu0 0.0
    %117 = vmatpush2.msra.mxu0 0.0
    %118 = vmatprep.subr.mxu0 0.0
    %119 = vmatpush2.msra.mxu0 0.0
    %120 = vmatprep.subr.mxu0 0.0
    %121 = vmatpush2.msra.mxu0 0.0
    %122 = vmatprep.subr.mxu0 0.0
    %123 = vmatpush2.msra.mxu0 0.0
    %124 = vmatprep.subr.mxu0 0.0
    %125 = vmatpush2.msra.mxu0 0.0
    %126 = vmatprep.subr.mxu0 0.0
    %127 = vmatpush2.msra.mxu0 0.0
    %128 = vmatprep.subr.mxu0 0.0
    %129 = vmatpush2.msra.mxu0 0.0
    %130 = vmatprep.subr.mxu0 0.0
    %131 = vmatpush2.msra.mxu0 0.0
    %132 = vmatprep.subr.mxu0 0.0
    %133 = vmatpush2.msra.mxu0 0.0
    %134 = vmatprep.subr.mxu0 0.0
    %135 = vmatpush2.msra.mxu0 0.0
    %136 = vmatprep.subr.mxu0 0.0
    %137 = vmatpush2.msra.mxu0 0.0
    %138 = vmatprep.subr.mxu0 0.0
    %139 = vmatpush2.msra.mxu0 0.0
    %140 = vmatprep.subr.mxu0 0.0
    %141 = vmatpush2.msra.mxu0 0.0
    %142 = vmatprep.subr.mxu0 0.0
    %143 = vmatpush2.msra.mxu0 0.0
    %144 = vmatprep.mubr.f32.mxu0 0.0
    %145 = vmatmul.mubr.f32.gmra.mxu0 %v78
    %v146 = vpop.f32.mrf.mxu0
    %v147 = vadd.f32 %v74, %v146
    %v148 = vpop.f32.mrf.mxu0
    %149 = vdwg.mxu0
    %v150 = vmax.f32 %v147, 0.0
    %v151 = vld [vmem:[%s3] sm:$0xff]
    %v152 = vld [vmem:[%s3 + $0x8] sm:$0xff]
    %v153 = vld [vmem:[%s3 + $0x10] sm:$0xff]
    %v154 = vld [vmem:[%s3 + $0x18] sm:$0xff]
    %v155 = vld [vmem:[%s3 + $0x20] sm:$0xff]
    %v156 = vld [vmem:[%s3 + $0x28] sm:$0xff]
    %v157 = vld [vmem:[%s3 + $0x30] sm:$0xff]
    %v158 = vld [vmem:[%s3 + $0x38] sm:$0xff]
    %v159 = vld [vmem:[%s3 + $0x40] sm:$0xff]
    %v160 = vld [vmem:[%s3 + $0x48] sm:$0xff]
    %v161 = vld [vmem:[%s3 + $0x50] sm:$0xff]
    %v162 = vld [vmem:[%s3 + $0x58] sm:$0xff]
    %v163 = vld [vmem:[%s4] sm:$0x1]
    %v165 = vlaneseq
    %v166 = vshrl.u32 %v165, 7
    %v167 = vsub.s32 0, %v166
    %v168 = vrot.slane %v163, %v167
    %vm170 = vcmask 785408
    %v172 = vsel %vm170, %v150, 0
    %174 = vmatprep.subr.mxu0 0.0
    %175 = vmatpush1.msra.mxu0 0.0
    %176 = vmatprep.subr.mxu0 0.0
    %177 = vmatpush1.msra.mxu0 0.0
    %178 = vmatprep.subr.mxu0 0.0
    %179 = vmatpush1.msra.mxu0 0.0
    %180 = vmatprep.subr.mxu0 0.0
    %181 = vmatpush1.msra.mxu0 0.0
    %182 = vmatprep.subr.mxu0 0.0
    %183 = vmatpush1.msra.mxu0 %v162
    %184 = vmatprep.subr.mxu0 0.0
    %185 = vmatpush1.msra.mxu0 %v161
    %186 = vmatprep.subr.mxu0 0.0
    %187 = vmatpush1.msra.mxu0 %v160
    %188 = vmatprep.subr.mxu0 0.0
    %189 = vmatpush1.msra.mxu0 %v159
    %190 = vmatprep.subr.mxu0 0.0
    %191 = vmatpush1.msra.mxu0 %v158
    %192 = vmatprep.subr.mxu0 0.0
    %193 = vmatpush1.msra.mxu0 %v157
    %194 = vmatprep.subr.mxu0 0.0
    %195 = vmatpush1.msra.mxu0 %v156
    %196 = vmatprep.subr.mxu0 0.0
    %197 = vmatpush1.msra.mxu0 %v155
    %198 = vmatprep.subr.mxu0 0.0
    %199 = vmatpush1.msra.mxu0 %v154
    %200 = vmatprep.subr.mxu0 0.0
    %201 = vmatpush1.msra.mxu0 %v153
    %202 = vmatprep.subr.mxu0 0.0
    %203 = vmatpush1.msra.mxu0 %v152
    %204 = vmatprep.subr.mxu0 0.0
    %205 = vmatpush1.msra.mxu0 %v151
    %206 = vmatprep.subr.mxu0 0.0
    %207 = vmatpush2.msra.mxu0 0.0
    %208 = vmatprep.subr.mxu0 0.0
    %209 = vmatpush2.msra.mxu0 0.0
    %210 = vmatprep.subr.mxu0 0.0
    %211 = vmatpush2.msra.mxu0 0.0
    %212 = vmatprep.subr.mxu0 0.0
    %213 = vmatpush2.msra.mxu0 0.0
    %214 = vmatprep.subr.mxu0 0.0
    %215 = vmatpush2.msra.mxu0 0.0
    %216 = vmatprep.subr.mxu0 0.0
    %217 = vmatpush2.msra.mxu0 0.0
    %218 = vmatprep.subr.mxu0 0.0
    %219 = vmatpush2.msra.mxu0 0.0
    %220 = vmatprep.subr.mxu0 0.0
    %221 = vmatpush2.msra.mxu0 0.0
    %222 = vmatprep.subr.mxu0 0.0
    %223 = vmatpush2.msra.mxu0 0.0
    %224 = vmatprep.subr.mxu0 0.0
    %225 = vmatpush2.msra.mxu0 0.0
    %226 = vmatprep.subr.mxu0 0.0
    %227 = vmatpush2.msra.mxu0 0.0
    %228 = vmatprep.subr.mxu0 0.0
    %229 = vmatpush2.msra.mxu0 0.0
    %230 = vmatprep.subr.mxu0 0.0
    %231 = vmatpush2.msra.mxu0 0.0
    %232 = vmatprep.subr.mxu0 0.0
    %233 = vmatpush2.msra.mxu0 0.0
    %234 = vmatprep.subr.mxu0 0.0
    %235 = vmatpush2.msra.mxu0 0.0
    %236 = vmatprep.subr.mxu0 0.0
    %237 = vmatpush2.msra.mxu0 0.0
    %238 = vmatprep.mubr.f32.mxu0 0.0
    %239 = vmatmul.mubr.f32.gmra.mxu0 %v172
    %v240 = vpop.f32.mrf.mxu0
    %v241 = vadd.f32 %v168, %v240
    %v242 = vpop.f32.mrf.mxu0
    %243 = vdwg.mxu0
    %v244 = vmax.f32 %v241, 0.0
    %v245 = vld [vmem:[#allocation2] sm:$0xff]
    %v246 = vld [vmem:[#allocation2 + $0x8] sm:$0xff]
    %v247 = vld [vmem:[#allocation2 + $0x10] sm:$0xff]
    %v248 = vld [vmem:[#allocation2 + $0x18] sm:$0xff]
    %v249 = vld [vmem:[#allocation2 + $0x20] sm:$0xff]
    %v250 = vld [vmem:[#allocation2 + $0x28] sm:$0xff]
    %v251 = vld [vmem:[#allocation2 + $0x30] sm:$0xff]
    %v252 = vld [vmem:[#allocation2 + $0x38] sm:$0xff]
    %v253 = vld [vmem:[#allocation2 + $0x40] sm:$0xff]
    %v254 = vld [vmem:[#allocation2 + $0x48] sm:$0xff]
    %v255 = vld [vmem:[#allocation2 + $0x50] sm:$0xff]
    %v256 = vld [vmem:[#allocation2 + $0x58] sm:$0xff]
    %v257 = vld [vmem:[%s6] sm:$0x1]
    %v259 = vlaneseq
    %v260 = vshrl.u32 %v259, 7
    %v261 = vsub.s32 0, %v260
    %v262 = vrot.slane %v257, %v261
    %v265 = vsel %vm170, %v244, 0
    %267 = vmatprep.subr.mxu0 0.0
    %268 = vmatpush1.msra.mxu0 0.0
    %269 = vmatprep.subr.mxu0 0.0
    %270 = vmatpush1.msra.mxu0 0.0
    %271 = vmatprep.subr.mxu0 0.0
    %272 = vmatpush1.msra.mxu0 0.0
    %273 = vmatprep.subr.mxu0 0.0
    %274 = vmatpush1.msra.mxu0 0.0
    %275 = vmatprep.subr.mxu0 0.0
    %276 = vmatpush1.msra.mxu0 %v256
    %277 = vmatprep.subr.mxu0 0.0
    %278 = vmatpush1.msra.mxu0 %v255
    %279 = vmatprep.subr.mxu0 0.0
    %280 = vmatpush1.msra.mxu0 %v254
    %281 = vmatprep.subr.mxu0 0.0
    %282 = vmatpush1.msra.mxu0 %v253
    %283 = vmatprep.subr.mxu0 0.0
    %284 = vmatpush1.msra.mxu0 %v252
    %285 = vmatprep.subr.mxu0 0.0
    %286 = vmatpush1.msra.mxu0 %v251
    %287 = vmatprep.subr.mxu0 0.0
    %288 = vmatpush1.msra.mxu0 %v250
    %289 = vmatprep.subr.mxu0 0.0
    %290 = vmatpush1.msra.mxu0 %v249
    %291 = vmatprep.subr.mxu0 0.0
    %292 = vmatpush1.msra.mxu0 %v248
    %293 = vmatprep.subr.mxu0 0.0
    %294 = vmatpush1.msra.mxu0 %v247
    %295 = vmatprep.subr.mxu0 0.0
    %296 = vmatpush1.msra.mxu0 %v246
    %297 = vmatprep.subr.mxu0 0.0
    %298 = vmatpush1.msra.mxu0 %v245
    %299 = vmatprep.subr.mxu0 0.0
    %300 = vmatpush2.msra.mxu0 0.0
    %301 = vmatprep.subr.mxu0 0.0
    %302 = vmatpush2.msra.mxu0 0.0
    %303 = vmatprep.subr.mxu0 0.0
    %304 = vmatpush2.msra.mxu0 0.0
    %305 = vmatprep.subr.mxu0 0.0
    %306 = vmatpush2.msra.mxu0 0.0
    %307 = vmatprep.subr.mxu0 0.0
    %308 = vmatpush2.msra.mxu0 0.0
    %309 = vmatprep.subr.mxu0 0.0
    %310 = vmatpush2.msra.mxu0 0.0
    %311 = vmatprep.subr.mxu0 0.0
    %312 = vmatpush2.msra.mxu0 0.0
    %313 = vmatprep.subr.mxu0 0.0
    %314 = vmatpush2.msra.mxu0 0.0
    %315 = vmatprep.subr.mxu0 0.0
    %316 = vmatpush2.msra.mxu0 0.0
    %317 = vmatprep.subr.mxu0 0.0
    %318 = vmatpush2.msra.mxu0 0.0
    %319 = vmatprep.subr.mxu0 0.0
    %320 = vmatpush2.msra.mxu0 0.0
    %321 = vmatprep.subr.mxu0 0.0
    %322 = vmatpush2.msra.mxu0 0.0
    %323 = vmatprep.subr.mxu0 0.0
    %324 = vmatpush2.msra.mxu0 0.0
    %325 = vmatprep.subr.mxu0 0.0
    %326 = vmatpush2.msra.mxu0 0.0
    %327 = vmatprep.subr.mxu0 0.0
    %328 = vmatpush2.msra.mxu0 0.0
    %329 = vmatprep.subr.mxu0 0.0
    %330 = vmatpush2.msra.mxu0 0.0
    %331 = vmatprep.mubr.f32.mxu0 0.0
    %332 = vmatmul.mubr.f32.gmra.mxu0 %v265
    %v333 = vpop.f32.mrf.mxu0
    %v334 = vadd.f32 %v262, %v333
    %v335 = vpop.f32.mrf.mxu0
    %336 = vdwg.mxu0
    %v337 = vmax.f32 %v334, 0.0
    %v338 = vld [vmem:[#allocation5] sm:$0xff]
    %v339 = vld [vmem:[#allocation5 + $0x8] sm:$0xff]
    %v340 = vld [vmem:[#allocation5 + $0x10] sm:$0xff]
    %v341 = vld [vmem:[#allocation5 + $0x18] sm:$0xff]
    %v342 = vld [vmem:[#allocation5 + $0x20] sm:$0xff]
    %v343 = vld [vmem:[#allocation5 + $0x28] sm:$0xff]
    %v344 = vld [vmem:[#allocation5 + $0x30] sm:$0xff]
    %v345 = vld [vmem:[#allocation5 + $0x38] sm:$0xff]
    %v346 = vld [vmem:[#allocation5 + $0x40] sm:$0xff]
    %v347 = vld [vmem:[#allocation5 + $0x48] sm:$0xff]
    %v348 = vld [vmem:[#allocation5 + $0x50] sm:$0xff]
    %v349 = vld [vmem:[#allocation5 + $0x58] sm:$0xff]
    %v350 = vld [vmem:[%s8] sm:$0x1]
    %v352 = vlaneseq
    %v353 = vshrl.u32 %v352, 7
    %v354 = vsub.s32 0, %v353
    %v355 = vrot.slane %v350, %v354
    %v358 = vsel %vm170, %v337, 0
    %360 = vmatprep.subr.mxu0 0.0
    %361 = vmatpush1.msra.mxu0 0.0
    %362 = vmatprep.subr.mxu0 0.0
    %363 = vmatpush1.msra.mxu0 0.0
    %364 = vmatprep.subr.mxu0 0.0
    %365 = vmatpush1.msra.mxu0 0.0
    %366 = vmatprep.subr.mxu0 0.0
    %367 = vmatpush1.msra.mxu0 0.0
    %368 = vmatprep.subr.mxu0 0.0
    %369 = vmatpush1.msra.mxu0 %v349
    %370 = vmatprep.subr.mxu0 0.0
    %371 = vmatpush1.msra.mxu0 %v348
    %372 = vmatprep.subr.mxu0 0.0
    %373 = vmatpush1.msra.mxu0 %v347
    %374 = vmatprep.subr.mxu0 0.0
    %375 = vmatpush1.msra.mxu0 %v346
    %376 = vmatprep.subr.mxu0 0.0
    %377 = vmatpush1.msra.mxu0 %v345
    %378 = vmatprep.subr.mxu0 0.0
    %379 = vmatpush1.msra.mxu0 %v344
    %380 = vmatprep.subr.mxu0 0.0
    %381 = vmatpush1.msra.mxu0 %v343
    %382 = vmatprep.subr.mxu0 0.0
    %383 = vmatpush1.msra.mxu0 %v342
    %384 = vmatprep.subr.mxu0 0.0
    %385 = vmatpush1.msra.mxu0 %v341
    %386 = vmatprep.subr.mxu0 0.0
    %387 = vmatpush1.msra.mxu0 %v340
    %388 = vmatprep.subr.mxu0 0.0
    %389 = vmatpush1.msra.mxu0 %v339
    %390 = vmatprep.subr.mxu0 0.0
    %391 = vmatpush1.msra.mxu0 %v338
    %392 = vmatprep.subr.mxu0 0.0
    %393 = vmatpush2.msra.mxu0 0.0
    %394 = vmatprep.subr.mxu0 0.0
    %395 = vmatpush2.msra.mxu0 0.0
    %396 = vmatprep.subr.mxu0 0.0
    %397 = vmatpush2.msra.mxu0 0.0
    %398 = vmatprep.subr.mxu0 0.0
    %399 = vmatpush2.msra.mxu0 0.0
    %400 = vmatprep.subr.mxu0 0.0
    %401 = vmatpush2.msra.mxu0 0.0
    %402 = vmatprep.subr.mxu0 0.0
    %403 = vmatpush2.msra.mxu0 0.0
    %404 = vmatprep.subr.mxu0 0.0
    %405 = vmatpush2.msra.mxu0 0.0
    %406 = vmatprep.subr.mxu0 0.0
    %407 = vmatpush2.msra.mxu0 0.0
    %408 = vmatprep.subr.mxu0 0.0
    %409 = vmatpush2.msra.mxu0 0.0
    %410 = vmatprep.subr.mxu0 0.0
    %411 = vmatpush2.msra.mxu0 0.0
    %412 = vmatprep.subr.mxu0 0.0
    %413 = vmatpush2.msra.mxu0 0.0
    %414 = vmatprep.subr.mxu0 0.0
    %415 = vmatpush2.msra.mxu0 0.0
    %416 = vmatprep.subr.mxu0 0.0
    %417 = vmatpush2.msra.mxu0 0.0
    %418 = vmatprep.subr.mxu0 0.0
    %419 = vmatpush2.msra.mxu0 0.0
    %420 = vmatprep.subr.mxu0 0.0
    %421 = vmatpush2.msra.mxu0 0.0
    %422 = vmatprep.subr.mxu0 0.0
    %423 = vmatpush2.msra.mxu0 0.0
    %424 = vmatprep.mubr.f32.mxu0 0.0
    %425 = vmatmul.mubr.f32.gmra.mxu0 %v358
    %v426 = vpop.f32.mrf.mxu0
    %v427 = vadd.f32 %v355, %v426
    %v428 = vpop.f32.mrf.mxu0
    %429 = vdwg.mxu0
    %v430 = vmax.f32 %v427, 0.0
    %v431 = vld [vmem:[%s9] sm:$0xff]
    %v432 = vld [vmem:[%s9 + $0x8] sm:$0xff]
    %v433 = vld [vmem:[%s9 + $0x10] sm:$0xff]
    %v434 = vld [vmem:[%s9 + $0x18] sm:$0xff]
    %v435 = vld [vmem:[%s9 + $0x20] sm:$0xff]
    %v436 = vld [vmem:[%s9 + $0x28] sm:$0xff]
    %v437 = vld [vmem:[%s9 + $0x30] sm:$0xff]
    %v438 = vld [vmem:[%s9 + $0x38] sm:$0xff]
    %v439 = vld [vmem:[%s9 + $0x40] sm:$0xff]
    %v440 = vld [vmem:[%s9 + $0x48] sm:$0xff]
    %v441 = vld [vmem:[%s9 + $0x50] sm:$0xff]
    %v442 = vld [vmem:[%s9 + $0x58] sm:$0xff]
    %v443 = vld [vmem:[%s10] sm:$0x1]
    %v445 = vlaneseq
    %v446 = vshrl.u32 %v445, 7
    %v447 = vsub.s32 0, %v446
    %v448 = vrot.slane %v443, %v447
    %v451 = vsel %vm170, %v430, 0
    %453 = vmatprep.subr.mxu0 0.0
    %454 = vmatpush1.msra.mxu0 0.0
    %455 = vmatprep.subr.mxu0 0.0
    %456 = vmatpush1.msra.mxu0 0.0
    %457 = vmatprep.subr.mxu0 0.0
    %458 = vmatpush1.msra.mxu0 0.0
    %459 = vmatprep.subr.mxu0 0.0
    %460 = vmatpush1.msra.mxu0 0.0
    %461 = vmatprep.subr.mxu0 0.0
    %462 = vmatpush1.msra.mxu0 %v442
    %463 = vmatprep.subr.mxu0 0.0
    %464 = vmatpush1.msra.mxu0 %v441
    %465 = vmatprep.subr.mxu0 0.0
    %466 = vmatpush1.msra.mxu0 %v440
    %467 = vmatprep.subr.mxu0 0.0
    %468 = vmatpush1.msra.mxu0 %v439
    %469 = vmatprep.subr.mxu0 0.0
    %470 = vmatpush1.msra.mxu0 %v438
    %471 = vmatprep.subr.mxu0 0.0
    %472 = vmatpush1.msra.mxu0 %v437
    %473 = vmatprep.subr.mxu0 0.0
    %474 = vmatpush1.msra.mxu0 %v436
    %475 = vmatprep.subr.mxu0 0.0
    %476 = vmatpush1.msra.mxu0 %v435
    %477 = vmatprep.subr.mxu0 0.0
    %478 = vmatpush1.msra.mxu0 %v434
    %479 = vmatprep.subr.mxu0 0.0
    %480 = vmatpush1.msra.mxu0 %v433
    %481 = vmatprep.subr.mxu0 0.0
    %482 = vmatpush1.msra.mxu0 %v432
    %483 = vmatprep.subr.mxu0 0.0
    %484 = vmatpush1.msra.mxu0 %v431
    %485 = vmatprep.subr.mxu0 0.0
    %486 = vmatpush2.msra.mxu0 0.0
    %487 = vmatprep.subr.mxu0 0.0
    %488 = vmatpush2.msra.mxu0 0.0
    %489 = vmatprep.subr.mxu0 0.0
    %490 = vmatpush2.msra.mxu0 0.0
    %491 = vmatprep.subr.mxu0 0.0
    %492 = vmatpush2.msra.mxu0 0.0
    %493 = vmatprep.subr.mxu0 0.0
    %494 = vmatpush2.msra.mxu0 0.0
    %495 = vmatprep.subr.mxu0 0.0
    %496 = vmatpush2.msra.mxu0 0.0
    %497 = vmatprep.subr.mxu0 0.0
    %498 = vmatpush2.msra.mxu0 0.0
    %499 = vmatprep.subr.mxu0 0.0
    %500 = vmatpush2.msra.mxu0 0.0
    %501 = vmatprep.subr.mxu0 0.0
    %502 = vmatpush2.msra.mxu0 0.0
    %503 = vmatprep.subr.mxu0 0.0
    %504 = vmatpush2.msra.mxu0 0.0
    %505 = vmatprep.subr.mxu0 0.0
    %506 = vmatpush2.msra.mxu0 0.0
    %507 = vmatprep.subr.mxu0 0.0
    %508 = vmatpush2.msra.mxu0 0.0
    %509 = vmatprep.subr.mxu0 0.0
    %510 = vmatpush2.msra.mxu0 0.0
    %511 = vmatprep.subr.mxu0 0.0
    %512 = vmatpush2.msra.mxu0 0.0
    %513 = vmatprep.subr.mxu0 0.0
    %514 = vmatpush2.msra.mxu0 0.0
    %515 = vmatprep.subr.mxu0 0.0
    %516 = vmatpush2.msra.mxu0 0.0
    %517 = vmatprep.mubr.f32.mxu0 0.0
    %518 = vmatmul.mubr.f32.gmra.mxu0 %v451
    %v519 = vpop.f32.mrf.mxu0
    %v520 = vadd.f32 %v448, %v519
    %v521 = vpop.f32.mrf.mxu0
    %522 = vdwg.mxu0
    %524 = vrot.lane.b32.xlu0 %v520, 120
    %v525 = vpop.permute.xlu0 %524
    %v527 = vmax.f32 %v520, %v525
    %528 = vrot.lane.b32.xlu0 %v520, 112
    %v529 = vpop.permute.xlu0 %528
    %v531 = vmax.f32 %v527, %v529
    %v532 = vsub.f32 %v520, %v531
    %v533 = vmul.f32 %v532, 1.442695
    %v534 = vpow.pop %v533
    %536 = vrot.lane.b32.xlu0 %v531, 8
    %v537 = vpop.permute.xlu0 %536
    %v539 = vsub.f32 %v520, %v537
    %v540 = vmul.f32 %v539, 1.442695
    %v541 = vpow.pop %v540
    %542 = vrot.lane.b32.xlu0 %v531, 16
    %v543 = vpop.permute.xlu0 %542
    %v545 = vsub.f32 %v520, %v543
    %v546 = vmul.f32 %v545, 1.442695
    %v547 = vpow.pop %v546
    %549 = vrot.lane.b32.xlu0 %v541, 120
    %v550 = vpop.permute.xlu0 %549
    %v552 = vadd.f32 %v534, %v550
    %554 = vrot.lane.b32.xlu0 %v547, 112
    %v555 = vpop.permute.xlu0 %554
    %v557 = vadd.f32 %v552, %v555
    %v558 = vrcp.pop %v557
    %v559 = vmul.f32 1.0, %v558
    %v560 = vmul.f32 %v534, %v559
    %562 = vrot.lane.b32.xlu0 %v559, 8
    %v563 = vpop.permute.xlu0 %562
    %v565 = vmul.f32 %v541, %v563
    %566 = vrot.lane.b32.xlu0 %v559, 16
    %v567 = vpop.permute.xlu0 %566
    %v569 = vmul.f32 %v547, %v567
    %v570 = vsel %vm76, %v560, %v565
    %vm571 = vcmask 130048
    %v572 = vsel %vm571, %v570, %v569
    %vm573 = vcmask 189440
    %574 = vst.msk [vmem:[#allocation7] sm:$0x3] %vm573, %v572
    // Predicated region
    $region54: #{tpu_custom_call.1} parent=1 // pred_check
      _
    $region55: #{tpu_custom_call.1} parent=1 // pred_check_branch
      %576 = sbr.rel (0) target = $region57
    $region56: #{tpu_custom_call.1} parent=1 // pred_region
      %s578 = ssub.s32 32, 32
      %579 = vsyncadd [#allocation4], %s578
      %s581 = sshll.u32 [#allocation7], 4
      %s582 = int_to_ptr.vmem [resolvable:$true] %s581
      %584 = dma.vmem_to_hbm [thread:$0]  %s582, 32, %s11, [#allocation4]
    $region57: #{tpu_custom_call.1} parent=1 // pred_fallthru
      _
    // Predicated region
    $region58: #{tpu_custom_call.1} parent=1 // pred_check
      _
    $region59: #{tpu_custom_call.1} parent=1 // pred_check_branch
      %586 = sbr.rel (0) target = $region61
    $region60: #{tpu_custom_call.1} parent=1 // pred_region
      %587 = dma.done [#allocation4], 32
    $region61: #{tpu_custom_call.1} parent=1 // pred_fallthru
      _
    %588 = vsyncpa [#allocation3], 1
    %589 = vsyncpa [#allocation6], 1
    %590 = vsyncpa [#allocation4], 1

</llo_original>
